<compile_context>
chip_gen: v7x
topology: tpu7x:2x2x1
jax: 0.10.0
libtpu: 0.0.40
codegen_flags: <defaults>
</compile_context>

<pallas_src>
import functools

import jax
import jax.numpy as jnp
from jax.experimental import pallas as pl
from jax.experimental.pallas import tpu as pltpu


# ---------------------------------------------------------------------------
# Shared in-kernel math
# ---------------------------------------------------------------------------

def _shared_mlp_gate(avg, mx, w1, w2):
    """avg, mx: (C, 1) f32 columns; w1: (Cr, C), w2: (C, Cr) (PyTorch (out,in) layout).

    Stacks the two pooled vectors as the columns of one (C, 2) matrix so a single
    weight push serves both branches, runs the MLP in transposed form
    y = W2 @ relu(W1 @ pooled), and returns the sigmoid gate as a (C, 1) column.
    """
    c = avg.shape[0]
    col = jax.lax.broadcasted_iota(jnp.int32, (c, 2), 1)           # 0 | 1 per lane
    pooled = jnp.where(col == 0, avg, mx)                          # (C, 2)
    h = jnp.maximum(
        jnp.dot(w1, pooled, preferred_element_type=jnp.float32), 0.0)   # (Cr, 2)
    y = jnp.dot(w2, h, preferred_element_type=jnp.float32)              # (C, 2)
    return jax.nn.sigmoid(y[:, 0:1] + y[:, 1:2])                        # (C, 1)


# ---------------------------------------------------------------------------
# Kernels
# ---------------------------------------------------------------------------

def _ca_fused_kernel(x_ref, w1_ref, w2_ref, o_ref):
    """Single pass: pooling + MLP + gate for one batch element.

    x_ref : (1, C, HW) input block (native dtype, no f32 clone)
    w1_ref: (Cr, C)    f32
    w2_ref: (C, Cr)    f32
    o_ref : (1, C, HW) output block
    """
    x = x_ref[0]                                                   # (C, HW)
    hw = x.shape[1]
    # Spatial (lane-axis) reductions with f32 accumulation.
    avg = jnp.sum(x, axis=1, keepdims=True, dtype=jnp.float32) * (1.0 / hw)  # (C, 1)
    mx = jnp.max(x, axis=1, keepdims=True).astype(jnp.float32)               # (C, 1)
    feats = _shared_mlp_gate(avg, mx, w1_ref[...], w2_ref[...])              # (C, 1)
    # Gate in the native activation dtype, broadcast over the lane (spatial) axis.
    o_ref[0] = x * feats.astype(o_ref.dtype)


def _ca_pool_mlp_kernel(x_ref, w1_ref, w2_ref, feats_ref, sum_sc, max_sc, *, inv_hw):
    """Two-pass, pass 1: accumulate sum/max over HW tiles; run the MLP on the last tile."""
    t = pl.program_id(1)

    @pl.when(t == 0)
    def _init():
        sum_sc[...] = jnp.zeros_like(sum_sc)
        max_sc[...] = jnp.full_like(max_sc, -jnp.inf)

    x = x_ref[0]                                                   # (C, T_hw)
    sum_sc[...] += jnp.sum(x, axis=1, keepdims=True, dtype=jnp.float32)
    max_sc[...] = jnp.maximum(
        max_sc[...], jnp.max(x, axis=1, keepdims=True).astype(jnp.float32))

    @pl.when(t == pl.num_programs(1) - 1)
    def _finalize():
        feats_ref[0] = _shared_mlp_gate(
            sum_sc[...] * inv_hw, max_sc[...], w1_ref[...], w2_ref[...])   # (C, 1)


def _ca_gate_kernel(x_ref, feats_ref, o_ref):
    """Two-pass, pass 2: broadcast the per-channel gate over the spatial (lane) axis."""
    o_ref[0] = x_ref[0] * feats_ref[0].astype(o_ref.dtype)


# ---------------------------------------------------------------------------
# Wrapper
# ---------------------------------------------------------------------------

def _pick_hw_tile(hw, c, itemsize, target_bytes):
    """Largest multiple-of-128 divisor of hw whose (c, tile) block fits target_bytes."""
    if hw % 128 != 0:
        return hw                      # lane axis cannot be tiled -> use full extent
    max_t = max(128, target_bytes // max(1, c * itemsize))
    best = None
    t = 128
    while t <= hw:
        if hw % t == 0 and t <= max_t:
            best = t
        t += 128
    return best if best is not None else hw


def _vmem_limit(block_bytes, weight_bytes):
    needed = 4 * block_bytes + weight_bytes + (8 << 20)   # 2x in + 2x out + weights + headroom
    return int(min(max(needed, 16 << 20), 40 << 20))


def channel_attention(x_nchw, w1_pt, w2_pt, *,
                      single_pass_budget_bytes=24 * 1024 * 1024,
                      hw_tile_budget_bytes=4 * 1024 * 1024):
    """Channel attention on an NCHW tensor.

    w1_pt: (C//ratio, C), w2_pt: (C, C//ratio) -- PyTorch Linear (out, in) layout.
    """
    B, C, H, W = x_nchw.shape
    HW = H * W
    Cr = w1_pt.shape[0]

    # NCHW is already (B, C, HW)-contiguous: this reshape is free (no transpose, no copy).
    x3 = x_nchw.reshape(B, C, HW)
    # Pre-cast weights once in the wrapper (no per-grid-step cast inside the kernel).
    w1 = w1_pt.astype(jnp.float32)
    w2 = w2_pt.astype(jnp.float32)

    itemsize = x_nchw.dtype.itemsize
    weight_bytes = 2 * C * Cr * 4
    full_block_bytes = C * HW * itemsize

    if 4 * full_block_bytes + weight_bytes <= single_pass_budget_bytes:
        # ---------------- fused single-pass ----------------
        out3 = pl.pallas_call(
            _ca_fused_kernel,
            out_shape=jax.ShapeDtypeStruct((B, C, HW), x_nchw.dtype),
            grid_spec=pltpu.PrefetchScalarGridSpec(
                num_scalar_prefetch=0,
                grid=(B,),
                in_specs=[
                    pl.BlockSpec((1, C, HW), lambda b: (b, 0, 0)),
                    pl.BlockSpec((Cr, C), lambda b: (0, 0)),
                    pl.BlockSpec((C, Cr), lambda b: (0, 0)),
                ],
                out_specs=pl.BlockSpec((1, C, HW), lambda b: (b, 0, 0)),
            ),
            compiler_params=pltpu.CompilerParams(
                dimension_semantics=("parallel",),
                vmem_limit_bytes=_vmem_limit(full_block_bytes, weight_bytes),
            ),
        )(x3, w1, w2)
        return out3.reshape(B, C, H, W)

    # ---------------- two-pass: (pool + MLP) then gate ----------------
    T_hw = _pick_hw_tile(HW, C, itemsize, hw_tile_budget_bytes)
    n_t = HW // T_hw
    tile_bytes = C * T_hw * itemsize
    vmem_limit = _vmem_limit(tile_bytes, weight_bytes)

    feats = pl.pallas_call(
        functools.partial(_ca_pool_mlp_kernel, inv_hw=1.0 / HW),
        out_shape=jax.ShapeDtypeStruct((B, C, 1), jnp.float32),
        grid_spec=pltpu.PrefetchScalarGridSpec(
            num_scalar_prefetch=0,
            grid=(B, n_t),
            in_specs=[
                pl.BlockSpec((1, C, T_hw), lambda b, t: (b, 0, t)),
                pl.BlockSpec((Cr, C), lambda b, t: (0, 0)),
                pl.BlockSpec((C, Cr), lambda b, t: (0, 0)),
            ],
            out_specs=pl.BlockSpec((1, C, 1), lambda b, t: (b, 0, 0)),
            scratch_shapes=[
                pltpu.VMEM((C, 1), jnp.float32),   # running sum
                pltpu.VMEM((C, 1), jnp.float32),   # running max
            ],
        ),
        compiler_params=pltpu.CompilerParams(
            dimension_semantics=("parallel", "arbitrary"),
            vmem_limit_bytes=vmem_limit,
        ),
    )(x3, w1, w2)

    out3 = pl.pallas_call(
        _ca_gate_kernel,
        out_shape=jax.ShapeDtypeStruct((B, C, HW), x_nchw.dtype),
        grid_spec=pltpu.PrefetchScalarGridSpec(
            num_scalar_prefetch=0,
            grid=(B, n_t),
            in_specs=[
                pl.BlockSpec((1, C, T_hw), lambda b, t: (b, 0, t)),
                pl.BlockSpec((1, C, 1), lambda b, t: (b, 0, 0)),
            ],
            out_specs=pl.BlockSpec((1, C, T_hw), lambda b, t: (b, 0, t)),
        ),
        compiler_params=pltpu.CompilerParams(
            # Both axes parallel so both v7x TensorCores get work even when B == 1.
            dimension_semantics=("parallel", "parallel"),
            vmem_limit_bytes=vmem_limit,
        ),
    )(x3, feats)
    return out3.reshape(B, C, H, W)


# ---------------------------------------------------------------------------
# Pure-JAX reference (identical semantics to the PyTorch forward)
# ---------------------------------------------------------------------------

def channel_attention_ref(x, w1_pt, w2_pt):
    avg = jnp.mean(x, axis=(2, 3))                       # (B, C)
    mx = jnp.max(x, axis=(2, 3))                         # (B, C)

    def mlp(v):
        return jnp.maximum(v @ w1_pt.T, 0.0) @ w2_pt.T

    feats = jax.nn.sigmoid(mlp(avg) + mlp(mx))           # (B, C)
    return x * feats[:, :, None, None]


if __name__ == "__main__":
    # n_channels must be divisible by ratio for the MLP bottleneck.
    B, C, H, W = 2, 8, 16, 16
    ratio = 4
    Cr = C // ratio

    key = jax.random.PRNGKey(0)
    kx, k1, k2 = jax.random.split(key, 3)
    x = jax.random.normal(kx, (B, C, H, W), dtype=jnp.float32)
    # PyTorch Linear layout: (out_features, in_features), no bias.
    w1 = jax.random.normal(k1, (Cr, C), dtype=jnp.float32) * 0.3
    w2 = jax.random.normal(k2, (C, Cr), dtype=jnp.float32) * 0.3

    ref = channel_attention_ref(x, w1, w2)

    # Fused single-pass path (default for small feature maps).
    out_fused = jax.block_until_ready(channel_attention(x, w1, w2))
    assert out_fused.shape == (B, C, H, W)
    assert jnp.allclose(out_fused, ref, atol=1e-5, rtol=1e-5), "fused path mismatch vs reference"

    # Two-pass path (pool+MLP tiled over HW, then gate), forced via a tiny budget,
    # so the large-feature-map / v7x code path is also exercised.
    out_two = jax.block_until_ready(
        channel_attention(x, w1, w2,
                          single_pass_budget_bytes=0,
                          hw_tile_budget_bytes=1024))
    assert jnp.allclose(out_two, ref, atol=1e-5, rtol=1e-5), "two-pass path mismatch vs reference"

    print("KERNEL_OK")
</pallas_src>

<mosaic_0001>
module attributes {stable_mosaic.version = 11 : i64} {
  func.func @_ca_fused_kernel(%arg0: i32, %arg1: memref<1x8x256xf32, #tpu.memory_space<vmem>>, %arg2: memref<2x8xf32, #tpu.memory_space<vmem>>, %arg3: memref<8x2xf32, #tpu.memory_space<vmem>>, %arg4: memref<1x8x256xf32, #tpu.memory_space<vmem>>) attributes {dimension_semantics = [#tpu.dimension_semantics<parallel>], iteration_bounds = array<i64: 2>, scalar_prefetch = 0 : i64, scratch_operands = 0 : i64, tpu.core_type = #tpu.core_type<tc>, window_params = [{transform_indices = @transform_0, window_bounds = array<i64: 1, 8, 256>}, {pipeline_mode = #tpu.pipeline_mode<synchronous>, transform_indices = @transform_1, window_bounds = array<i64: 2, 8>}, {pipeline_mode = #tpu.pipeline_mode<synchronous>, transform_indices = @transform_2, window_bounds = array<i64: 8, 2>}, {transform_indices = @transform_3, window_bounds = array<i64: 1, 8, 256>}]} {
    %c0 = arith.constant 0 : index
    %c0_0 = arith.constant 0 : index
    %c0_1 = arith.constant 0 : index
    %0 = vector.load %arg1[%c0, %c0_0, %c0_1] : memref<1x8x256xf32, #tpu.memory_space<vmem>>, vector<1x8x256xf32>
    %1 = vector.shape_cast %0 : vector<1x8x256xf32> to vector<8x256xf32>
    %cst = arith.constant dense<0.000000e+00> : vector<8xf32>
    %2 = vector.multi_reduction <add>, %1, %cst [1] : vector<8x256xf32> to vector<8xf32>
    %3 = vector.shape_cast %2 : vector<8xf32> to vector<8x1xf32>
    %cst_2 = arith.constant 3.906250e-03 : f32
    %4 = vector.broadcast %cst_2 : f32 to vector<8x1xf32>
    %5 = arith.mulf %3, %4 : vector<8x1xf32>
    %cst_3 = arith.constant dense<0xFF800000> : vector<8xf32>
    %6 = vector.multi_reduction <maximumf>, %1, %cst_3 [1] : vector<8x256xf32> to vector<8xf32>
    %7 = vector.shape_cast %6 : vector<8xf32> to vector<8x1xf32>
    %c0_4 = arith.constant 0 : index
    %c0_5 = arith.constant 0 : index
    %8 = vector.load %arg2[%c0_4, %c0_5] : memref<2x8xf32, #tpu.memory_space<vmem>>, vector<2x8xf32>
    %c0_6 = arith.constant 0 : index
    %c0_7 = arith.constant 0 : index
    %9 = vector.load %arg3[%c0_6, %c0_7] : memref<8x2xf32, #tpu.memory_space<vmem>>, vector<8x2xf32>
    %10 = tpu.iota {dimensions = array<i32: 1>} : vector<8x2xi32>
    %c0_i32 = arith.constant 0 : i32
    %11 = vector.broadcast %c0_i32 : i32 to vector<8x2xi32>
    %12 = arith.cmpi eq, %10, %11 : vector<8x2xi32>
    %13 = vector.shape_cast %5 : vector<8x1xf32> to vector<8x1xf32>
    %14 = vector.broadcast %13 : vector<8x1xf32> to vector<8x2xf32>
    %15 = vector.shape_cast %7 : vector<8x1xf32> to vector<8x1xf32>
    %16 = vector.broadcast %15 : vector<8x1xf32> to vector<8x2xf32>
    %17 = arith.select %12, %14, %16 : vector<8x2xi1>, vector<8x2xf32>
    %cst_8 = arith.constant dense<0.000000e+00> : vector<2x2xf32>
    %18 = tpu.matmul %8, %17, %cst_8 {dimension_numbers = #tpu.dot_dimension_numbers<[1], [0], [0], [1], [0, 0, 1, 1], [], []>} : vector<2x8xf32>, vector<8x2xf32>, vector<2x2xf32> -> vector<2x2xf32>
    %cst_9 = arith.constant 0.000000e+00 : f32
    %19 = vector.broadcast %cst_9 : f32 to vector<2x2xf32>
    %20 = arith.maximumf %18, %19 : vector<2x2xf32>
    %cst_10 = arith.constant dense<0.000000e+00> : vector<8x2xf32>
    %21 = tpu.matmul %9, %20, %cst_10 {dimension_numbers = #tpu.dot_dimension_numbers<[1], [0], [0], [1], [0, 0, 1, 1], [], []>} : vector<8x2xf32>, vector<2x2xf32>, vector<8x2xf32> -> vector<8x2xf32>
    %22 = vector.extract_strided_slice %21 {offsets = [0, 0], sizes = [8, 1], strides = [1, 1]} : vector<8x2xf32> to vector<8x1xf32>
    %23 = vector.extract_strided_slice %21 {offsets = [0, 1], sizes = [8, 1], strides = [1, 1]} : vector<8x2xf32> to vector<8x1xf32>
    %24 = arith.addf %22, %23 : vector<8x1xf32>
    %25 = arith.negf %24 : vector<8x1xf32>
    %26 = math.exp %25 : vector<8x1xf32>
    %cst_11 = arith.constant 1.000000e+00 : f32
    %27 = vector.broadcast %cst_11 : f32 to vector<8x1xf32>
    %28 = arith.addf %27, %26 : vector<8x1xf32>
    %29 = arith.divf %27, %28 : vector<8x1xf32>
    %30 = vector.broadcast %29 : vector<8x1xf32> to vector<8x256xf32>
    %31 = arith.mulf %1, %30 : vector<8x256xf32>
    %c0_12 = arith.constant 0 : index
    %c0_13 = arith.constant 0 : index
    %c0_14 = arith.constant 0 : index
    %32 = vector.load %arg4[%c0_12, %c0_13, %c0_14] : memref<1x8x256xf32, #tpu.memory_space<vmem>>, vector<1x8x256xf32>
    %33 = vector.shape_cast %32 : vector<1x8x256xf32> to vector<8x256xf32>
    %34 = vector.shape_cast %31 : vector<8x256xf32> to vector<1x8x256xf32>
    tpu.vector_store %arg4[%c0_12, %c0_13, %c0_14], %34 {strides = array<i32>} : memref<1x8x256xf32, #tpu.memory_space<vmem>>, vector<1x8x256xf32>,
    return
  }
  func.func @transform_0(%arg0: i32) -> (i32, i32, i32) {
    %c0_i32 = arith.constant 0 : i32
    %c0_i32_0 = arith.constant 0 : i32
    %c0_i32_1 = arith.constant 0 : i32
    return %arg0, %c0_i32, %c0_i32_0 : i32, i32, i32
  }
  func.func @transform_1(%arg0: i32) -> (i32, i32) {
    %c0_i32 = arith.constant 0 : i32
    %c0_i32_0 = arith.constant 0 : i32
    %c0_i32_1 = arith.constant 0 : i32
    return %c0_i32, %c0_i32_0 : i32, i32
  }
  func.func @transform_2(%arg0: i32) -> (i32, i32) {
    %c0_i32 = arith.constant 0 : i32
    %c0_i32_0 = arith.constant 0 : i32
    %c0_i32_1 = arith.constant 0 : i32
    return %c0_i32, %c0_i32_0 : i32, i32
  }
  func.func @transform_3(%arg0: i32) -> (i32, i32, i32) {
    %c0_i32 = arith.constant 0 : i32
    %c0_i32_0 = arith.constant 0 : i32
    %c0_i32_1 = arith.constant 0 : i32
    return %arg0, %c0_i32, %c0_i32_0 : i32, i32, i32
  }
}

</mosaic_0001>

<llo_original>
// kernel: tpu_custom_call.1
$region0: #{tpu_custom_call.1}
  #allocation0 [shape = 'u32[]', space=smem, size = 0x4, offset = 0x4, fixed_abs, tag = 'smem constant byte address 0x4 - core index']
  #allocation1 [shape = 'u32[144,128]{1,0:T(1,128)}', space=vmem, size = 0x12000, scoped, tag = 'internal scratch']
  %s0 = inlined_call_operand.hbm [shape: f32[2,8,256], index: 0, kind: input, shape index: {}]
  %s1 = inlined_call_operand.vmem [shape: f32[2,8], index: 1, kind: input, shape index: {}]
  %s2 = inlined_call_operand.vmem [shape: f32[8,2], index: 2, kind: input, shape index: {}]
  %s3 = inlined_call_operand.hbm [shape: f32[2,8,256], index: 3, kind: output, shape index: {}]
  %s4 = sld [smem:[#allocation0]]
  $region49: #{tpu_custom_call.1} parent=0
    _
  %s6 = ssub.s32 1, %s4
  %s7 = scalar_select 0, %s6, %s4
  $region1: #{tpu_custom_call.1} parent=0
    #allocation2 [shape = 'u8[16384]{0}', space=vmem, size = 0x4000, scoped, tag = 'input window, operand 0']
    #allocation3 [shape = 's32[2]{0}', space=sflag, size = 0x8, scoped, tag = 'scoped memory for tpu_custom_call.1']
    #allocation4 [shape = 's32[2]{0}', space=sflag, size = 0x8, scoped, tag = 'scoped memory for tpu_custom_call.1']
    #allocation5 [shape = 'u8[16384]{0}', space=vmem, size = 0x4000, scoped, tag = 'output window, operand 0']
    %8 = vsyncpa [#allocation3], 0
    %s9 = scalar_lea.sflag [#allocation3], 1
    %10 = vsyncpa %s9, 0
    %11 = vsyncpa [#allocation4], 0
    %s12 = scalar_lea.sflag [#allocation4], 1
    %13 = vsyncpa %s12, 0
    loop: start=0, step=1, limit=4
    $region2: #{tpu_custom_call.1} parent=1 // loop_pre_header
      _
    $region3: #{tpu_custom_call.1} parent=1 // loop_header
      %s15 = sphi 0, %s19
      %p16 = scmp.ge.s32.totalorder %s15, 4
      %s25 = sphi 0, %s27
      %s28 = sphi 0, %s25
      %s29 = sphi 0, %s28
      %s45 = sphi 0, %s29
      %s49 = sphi 0, %s49
      %s51 = sphi 0, %s49
      %s52 = sphi 0, %s51
      %s66 = sphi 0, %s52
      %s70 = sphi 0, %s70
      %s72 = sphi 0, %s70
      %s73 = sphi 0, %s72
      %s87 = sphi 0, %s73
      %s93 = sphi 0, %s95
      %s96 = sphi 0, %s93
      %s97 = sphi 0, %s96
      %s113 = sphi 0, %s97
    $region4: #{tpu_custom_call.1} parent=1 // loop_header_branch
      %18 = sbr.rel (%p16) target = $region8
    $region5: #{tpu_custom_call.1} parent=1 // loop_body
      %s20 = ssub.s32 %s15, 1
      %s21 = ssub.s32 %s15, 2
      %s22 = sadd.s32 %s15, 1
      %s23 = ssub.s32 %s15, %s22
      %p24 = scmp.eq.s32.totalorder %s23, 0
      %s26 = sadd.s32 %s25, 1
      %s27 = scalar_select %p24, %s25, %s26
      %p30 = pneg %p24
      %p31 = scmp.eq.s32.totalorder %s15, 1
      %p32 = por %p30, %p31
      %p33 = scmp.ne.s32.totalorder %s25, %s28
      %p34 = scmp.eq.s32.totalorder %s15, 0
      %p35 = por %p33, %p34
      %p36 = scmp.ne.s32.totalorder %s25, %s28
      %p37 = scmp.eq.s32.totalorder %s20, 1
      %p38 = por %p36, %p37
      %p39 = scmp.ne.s32.totalorder %s28, %s29
      %p40 = scmp.eq.s32.totalorder %s20, 0
      %p41 = por %p39, %p40
      %p42 = scmp.ne.s32.totalorder %s28, %s29
      %p43 = scmp.eq.s32.totalorder %s21, 1
      %p44 = por %p42, %p43
      %p46 = scmp.ne.s32.totalorder %s29, %s45
      %p47 = scmp.eq.s32.totalorder %s21, 0
      %p48 = por %p46, %p47
      %s50 = sadd.s32 %s49, 1
      %p53 = scmp.eq.s32.totalorder %s15, 1
      %p54 = scmp.ne.s32.totalorder %s49, %s51
      %p55 = scmp.eq.s32.totalorder %s15, 0
      %p56 = por %p54, %p55
      %p57 = scmp.ne.s32.totalorder %s49, %s51
      %p58 = scmp.eq.s32.totalorder %s20, 1
      %p59 = por %p57, %p58
      %p60 = scmp.ne.s32.totalorder %s51, %s52
      %p61 = scmp.eq.s32.totalorder %s20, 0
      %p62 = por %p60, %p61
      %p63 = scmp.ne.s32.totalorder %s51, %s52
      %p64 = scmp.eq.s32.totalorder %s21, 1
      %p65 = por %p63, %p64
      %p67 = scmp.ne.s32.totalorder %s52, %s66
      %p68 = scmp.eq.s32.totalorder %s21, 0
      %p69 = por %p67, %p68
      %s71 = sadd.s32 %s70, 1
      %p74 = scmp.eq.s32.totalorder %s15, 1
      %p75 = scmp.ne.s32.totalorder %s70, %s72
      %p76 = scmp.eq.s32.totalorder %s15, 0
      %p77 = por %p75, %p76
      %p78 = scmp.ne.s32.totalorder %s70, %s72
      %p79 = scmp.eq.s32.totalorder %s20, 1
      %p80 = por %p78, %p79
      %p81 = scmp.ne.s32.totalorder %s72, %s73
      %p82 = scmp.eq.s32.totalorder %s20, 0
      %p83 = por %p81, %p82
      %p84 = scmp.ne.s32.totalorder %s72, %s73
      %p85 = scmp.eq.s32.totalorder %s21, 1
      %p86 = por %p84, %p85
      %p88 = scmp.ne.s32.totalorder %s73, %s87
      %p89 = scmp.eq.s32.totalorder %s21, 0
      %p90 = por %p88, %p89
      %s91 = ssub.s32 %s15, %s22
      %p92 = scmp.eq.s32.totalorder %s91, 0
      %s94 = sadd.s32 %s93, 1
      %s95 = scalar_select %p92, %s93, %s94
      %p98 = pneg %p92
      %p99 = scmp.eq.s32.totalorder %s15, 1
      %p100 = por %p98, %p99
      %p101 = scmp.ne.s32.totalorder %s93, %s96
      %p102 = scmp.eq.s32.totalorder %s15, 0
      %p103 = por %p101, %p102
      %p104 = scmp.ne.s32.totalorder %s93, %s96
      %p105 = scmp.eq.s32.totalorder %s20, 1
      %p106 = por %p104, %p105
      %p107 = scmp.ne.s32.totalorder %s96, %s97
      %p108 = scmp.eq.s32.totalorder %s20, 0
      %p109 = por %p107, %p108
      %p110 = scmp.ne.s32.totalorder %s96, %s97
      %p111 = scmp.eq.s32.totalorder %s21, 1
      %p112 = por %p110, %p111
      %p114 = scmp.ne.s32.totalorder %s97, %s113
      %p115 = scmp.eq.s32.totalorder %s21, 0
      %p116 = por %p114, %p115
      %p117 = scmp.le.s32.totalorder 1, %s15
      %p118 = scmp.lt.s32.totalorder %s15, 3
      %p119 = pnand %p117, %p118
      %p120 = pneg %p119
      // Predicated region
      $region9: #{tpu_custom_call.1} parent=5 // pred_check
        _
      $region10: #{tpu_custom_call.1} parent=5 // pred_check_branch
        %122 = sbr.rel (%p119) target = $region12
      $region11: #{tpu_custom_call.1} parent=5 // pred_region
        %s123 = ssub.s32 %s15, 1
        // Predicated region
        $region13: #{tpu_custom_call.1} parent=11 // pred_check
          %p124 = pneg %p62
        $region14: #{tpu_custom_call.1} parent=11 // pred_check_branch
          %126 = sbr.rel (%p124) target = $region16
        $region15: #{tpu_custom_call.1} parent=11 // pred_region
          _
        $region16: #{tpu_custom_call.1} parent=11 // pred_fallthru
          _
        // Predicated region
        $region17: #{tpu_custom_call.1} parent=11 // pred_check
          %p127 = pneg %p83
        $region18: #{tpu_custom_call.1} parent=11 // pred_check_branch
          %129 = sbr.rel (%p127) target = $region20
        $region19: #{tpu_custom_call.1} parent=11 // pred_region
          _
        $region20: #{tpu_custom_call.1} parent=11 // pred_fallthru
          _
      $region12: #{tpu_custom_call.1} parent=5 // pred_fallthru
        _
      %p130 = scmp.lt.s32.totalorder %s15, 2
      // Predicated region
      $region21: #{tpu_custom_call.1} parent=5 // pred_check
        %p131 = pneg %p130
      $region22: #{tpu_custom_call.1} parent=5 // pred_check_branch
        %133 = sbr.rel (%p131) target = $region24
      $region23: #{tpu_custom_call.1} parent=5 // pred_region
        // Predicated region
        $region25: #{tpu_custom_call.1} parent=23 // pred_check
          %p134 = pneg %p35
        $region26: #{tpu_custom_call.1} parent=23 // pred_check_branch
          %136 = sbr.rel (%p134) target = $region28
        $region27: #{tpu_custom_call.1} parent=23 // pred_region
          %s137 = sand.u32 %s25, 1
          %s138 = scalar_lea.sflag [#allocation3], %s137
          %s139 = sand.u32 %s25, 1
          %s140 = smul.addr %s139, 16
          %s141 = scalar_lea.vmem [#allocation2], %s140
          %s143 = ssub.s32 256, 256
          %144 = vsyncadd %s138, %s143
          %s145 = smul.addr %s15, 2
          %s146 = smul.addr %s145, 128
          %s147 = scalar_lea.hbm %s0, %s146
          %s149 = sshll.u32 %s141, 4
          %s150 = int_to_ptr.vmem [resolvable:$true] %s149
          %152 = dma.hbm_to_vmem [thread:$0]  %s147, 256, %s150, %s138
        $region28: #{tpu_custom_call.1} parent=23 // pred_fallthru
          _
      $region24: #{tpu_custom_call.1} parent=5 // pred_fallthru
        _
      %p153 = scmp.le.s32.totalorder 1, %s15
      %p154 = scmp.lt.s32.totalorder %s15, 3
      %p155 = pnand %p153, %p154
      %p156 = pneg %p155
      // Predicated region
      $region29: #{tpu_custom_call.1} parent=5 // pred_check
        _
      $region30: #{tpu_custom_call.1} parent=5 // pred_check_branch
        %158 = sbr.rel (%p155) target = $region32
      $region31: #{tpu_custom_call.1} parent=5 // pred_region
        %s159 = ssub.s32 %s15, 1
        %s160 = sand.u32 %s28, 1
        %s161 = scalar_lea.sflag [#allocation3], %s160
        %s162 = sand.u32 %s28, 1
        %s163 = smul.addr %s162, 16
        %s164 = scalar_lea.vmem [#allocation2], %s163
        // Predicated region
        $region33: #{tpu_custom_call.1} parent=31 // pred_check
          %p165 = pneg %p41
        $region34: #{tpu_custom_call.1} parent=31 // pred_check_branch
          %167 = sbr.rel (%p165) target = $region36
        $region35: #{tpu_custom_call.1} parent=31 // pred_region
          %168 = dma.done %s161, 256
        $region36: #{tpu_custom_call.1} parent=31 // pred_fallthru
          _
        %s169 = sand.u32 %s28, 1
        %s170 = scalar_lea.sflag [#allocation3], %s169
        %s171 = sand.u32 %s28, 1
        %s172 = smul.addr %s171, 16
        %s173 = scalar_lea.vmem [#allocation2], %s172
        %p174 = pneg %p41
        %p175 = pneg %p38
        %p176 = pneg %p62
        %p177 = pneg %p59
        %p178 = pneg %p83
        %p179 = pneg %p80
        %p180 = pneg %p109
        %p181 = pneg %p106
        %s182 = sand.u32 %s96, 1
        %s183 = scalar_lea.sflag [#allocation4], %s182
        %s184 = sand.u32 %s96, 1
        %s185 = smul.addr %s184, 16
        %s186 = scalar_lea.vmem [#allocation5], %s185
        %v187 = vld [vmem:[%s164] sm:$0xff]
        %v188 = vld [vmem:[%s164 + $0x8] sm:$0xff]
        %v189 = vadd.f32 %v187, %v188
        %190 = vadd.xlane.f32.xlu0 %v189
        %v191 = vpop.xlane.xlu0 %190
        %v192 = vmul.f32 %v191, 0.00390625
        %v193 = vmax.f32 %v187, %v188
        %194 = vmax.xlane.f32.xlu0 %v193
        %v195 = vpop.xlane.xlu0 %194
        %v196 = vld [vmem:[%s1] sm:$0x3]
        %v197 = vld [vmem:[%s2] sm:$0xff]
        %v198 = vlaneseq
        %v199 = vand.u32 %v198, 127
        %vm200 = vcmp.eq.s32.totalorder %v199, 0
        %v201 = vsel %vm200, %v192, %v195
        %vm202 = vcmask 64512
        %v204 = vsel %vm202, %v196, 0
        %206 = vmatprep.subr.mxu0 0.0
        %207 = vmatpush1.msra.mxu0 %v201
        %208 = vmatprep.subr.mxu0 0.0
        %209 = vmatpush1.msra.mxu0 0.0
        %210 = vmatprep.subr.mxu0 0.0
        %211 = vmatpush1.msra.mxu0 0.0
        %212 = vmatprep.subr.mxu0 0.0
        %213 = vmatpush1.msra.mxu0 0.0
        %214 = vmatprep.subr.mxu0 0.0
        %215 = vmatpush1.msra.mxu0 0.0
        %216 = vmatprep.subr.mxu0 0.0
        %217 = vmatpush1.msra.mxu0 0.0
        %218 = vmatprep.subr.mxu0 0.0
        %219 = vmatpush1.msra.mxu0 0.0
        %220 = vmatprep.subr.mxu0 0.0
        %221 = vmatpush1.msra.mxu0 0.0
        %222 = vmatprep.subr.mxu0 0.0
        %223 = vmatpush1.msra.mxu0 0.0
        %224 = vmatprep.subr.mxu0 0.0
        %225 = vmatpush1.msra.mxu0 0.0
        %226 = vmatprep.subr.mxu0 0.0
        %227 = vmatpush1.msra.mxu0 0.0
        %228 = vmatprep.subr.mxu0 0.0
        %229 = vmatpush1.msra.mxu0 0.0
        %230 = vmatprep.subr.mxu0 0.0
        %231 = vmatpush1.msra.mxu0 0.0
        %232 = vmatprep.subr.mxu0 0.0
        %233 = vmatpush1.msra.mxu0 0.0
        %234 = vmatprep.subr.mxu0 0.0
        %235 = vmatpush1.msra.mxu0 0.0
        %236 = vmatprep.subr.mxu0 0.0
        %237 = vmatpush1.msra.mxu0 0.0
        %238 = vmatprep.subr.mxu0 0.0
        %239 = vmatpush1.msra.mxu0 0.0
        %240 = vmatprep.subr.mxu0 0.0
        %241 = vmatpush1.msra.mxu0 0.0
        %242 = vmatprep.subr.mxu0 0.0
        %243 = vmatpush1.msra.mxu0 0.0
        %244 = vmatprep.subr.mxu0 0.0
        %245 = vmatpush1.msra.mxu0 0.0
        %246 = vmatprep.subr.mxu0 0.0
        %247 = vmatpush1.msra.mxu0 0.0
        %248 = vmatprep.subr.mxu0 0.0
        %249 = vmatpush1.msra.mxu0 0.0
        %250 = vmatprep.subr.mxu0 0.0
        %251 = vmatpush1.msra.mxu0 0.0
        %252 = vmatprep.subr.mxu0 0.0
        %253 = vmatpush1.msra.mxu0 0.0
        %254 = vmatprep.subr.mxu0 0.0
        %255 = vmatpush1.msra.mxu0 0.0
        %256 = vmatprep.subr.mxu0 0.0
        %257 = vmatpush1.msra.mxu0 0.0
        %258 = vmatprep.subr.mxu0 0.0
        %259 = vmatpush1.msra.mxu0 0.0
        %260 = vmatprep.subr.mxu0 0.0
        %261 = vmatpush1.msra.mxu0 0.0
        %262 = vmatprep.subr.mxu0 0.0
        %263 = vmatpush1.msra.mxu0 0.0
        %264 = vmatprep.subr.mxu0 0.0
        %265 = vmatpush1.msra.mxu0 0.0
        %266 = vmatprep.subr.mxu0 0.0
        %267 = vmatpush1.msra.mxu0 0.0
        %268 = vmatprep.subr.mxu0 0.0
        %269 = vmatpush1.msra.mxu0 0.0
        %270 = vmatprep.mubr.f32.mxu0 0.0
        %271 = vmatmul.mubr.f32.gmra.mrb[0].mxu0 %v204
        %v272 = vpop.f32.mrb[0].mxu0
        %v273 = vadd.f32 0.0, %v272
        %v274 = vpop.f32.mrb[0].mxu0
        %275 = vdwg.mxu0
        %v276 = vmax.f32 %v273, 0.0
        %vm277 = vcmask 15360
        %v279 = vsel %vm277, %v197, 0
        %vm281 = vcmask 1041408
        %v283 = vsel %vm281, %v276, 0
        %285 = vmatprep.subr.mxu0 0.0
        %286 = vmatpush1.msra.mxu0 %v283
        %287 = vmatprep.subr.mxu0 0.0
        %288 = vmatpush1.msra.mxu0 0.0
        %289 = vmatprep.subr.mxu0 0.0
        %290 = vmatpush1.msra.mxu0 0.0
        %291 = vmatprep.subr.mxu0 0.0
        %292 = vmatpush1.msra.mxu0 0.0
        %293 = vmatprep.subr.mxu0 0.0
        %294 = vmatpush1.msra.mxu0 0.0
        %295 = vmatprep.subr.mxu0 0.0
        %296 = vmatpush1.msra.mxu0 0.0
        %297 = vmatprep.subr.mxu0 0.0
        %298 = vmatpush1.msra.mxu0 0.0
        %299 = vmatprep.subr.mxu0 0.0
        %300 = vmatpush1.msra.mxu0 0.0
        %301 = vmatprep.subr.mxu0 0.0
        %302 = vmatpush1.msra.mxu0 0.0
        %303 = vmatprep.subr.mxu0 0.0
        %304 = vmatpush1.msra.mxu0 0.0
        %305 = vmatprep.subr.mxu0 0.0
        %306 = vmatpush1.msra.mxu0 0.0
        %307 = vmatprep.subr.mxu0 0.0
        %308 = vmatpush1.msra.mxu0 0.0
        %309 = vmatprep.subr.mxu0 0.0
        %310 = vmatpush1.msra.mxu0 0.0
        %311 = vmatprep.subr.mxu0 0.0
        %312 = vmatpush1.msra.mxu0 0.0
        %313 = vmatprep.subr.mxu0 0.0
        %314 = vmatpush1.msra.mxu0 0.0
        %315 = vmatprep.subr.mxu0 0.0
        %316 = vmatpush1.msra.mxu0 0.0
        %317 = vmatprep.subr.mxu0 0.0
        %318 = vmatpush1.msra.mxu0 0.0
        %319 = vmatprep.subr.mxu0 0.0
        %320 = vmatpush1.msra.mxu0 0.0
        %321 = vmatprep.subr.mxu0 0.0
        %322 = vmatpush1.msra.mxu0 0.0
        %323 = vmatprep.subr.mxu0 0.0
        %324 = vmatpush1.msra.mxu0 0.0
        %325 = vmatprep.subr.mxu0 0.0
        %326 = vmatpush1.msra.mxu0 0.0
        %327 = vmatprep.subr.mxu0 0.0
        %328 = vmatpush1.msra.mxu0 0.0
        %329 = vmatprep.subr.mxu0 0.0
        %330 = vmatpush1.msra.mxu0 0.0
        %331 = vmatprep.subr.mxu0 0.0
        %332 = vmatpush1.msra.mxu0 0.0
        %333 = vmatprep.subr.mxu0 0.0
        %334 = vmatpush1.msra.mxu0 0.0
        %335 = vmatprep.subr.mxu0 0.0
        %336 = vmatpush1.msra.mxu0 0.0
        %337 = vmatprep.subr.mxu0 0.0
        %338 = vmatpush1.msra.mxu0 0.0
        %339 = vmatprep.subr.mxu0 0.0
        %340 = vmatpush1.msra.mxu0 0.0
        %341 = vmatprep.subr.mxu0 0.0
        %342 = vmatpush1.msra.mxu0 0.0
        %343 = vmatprep.subr.mxu0 0.0
        %344 = vmatpush1.msra.mxu0 0.0
        %345 = vmatprep.subr.mxu0 0.0
        %346 = vmatpush1.msra.mxu0 0.0
        %347 = vmatprep.subr.mxu0 0.0
        %348 = vmatpush1.msra.mxu0 0.0
        %349 = vmatprep.mubr.f32.mxu0 0.0
        %350 = vmatmul.mubr.f32.gmra.mrb[0].mxu0 %v279
        %v351 = vpop.f32.mrb[0].mxu0
        %v352 = vadd.f32 0.0, %v351
        %v353 = vpop.f32.mrb[0].mxu0
        %354 = vdwg.mxu0
        %356 = vrot.lane.b32.xlu0 %v352, 127
        %v357 = vpop.permute.xlu0 %356
        %v359 = vadd.f32 %v352, %v357
        %v360 = vxor.u32 %v359, 2147483648
        %v361 = vmul.f32 %v360, 1.442695
        %v362 = vpow.pop %v361
        %v363 = vadd.f32 %v362, 1.0
        %v364 = vrcp.pop %v363
        %v365 = vmul.f32 1.0, %v364
        %367 = vset.pattern.permute.xlu0 0
        %368 = vperm.xlu0 %367, %v365
        %v369 = vpop.permute.xlu0 %368
        %v371 = vmul.f32 %v187, %v369
        %v372 = vmul.f32 %v188, %v369
        %373 = vst [vmem:[%s186] sm:$0xff] %v371
        %374 = vst [vmem:[%s186 + $0x8] sm:$0xff] %v372
        %s375 = sand.u32 %s96, 1
        %s376 = scalar_lea.sflag [#allocation4], %s375
        %s377 = sand.u32 %s96, 1
        %s378 = smul.addr %s377, 16
        %s379 = scalar_lea.vmem [#allocation5], %s378
        // Predicated region
        $region37: #{tpu_custom_call.1} parent=31 // pred_check
          %p380 = pneg %p106
        $region38: #{tpu_custom_call.1} parent=31 // pred_check_branch
          %382 = sbr.rel (%p380) target = $region40
        $region39: #{tpu_custom_call.1} parent=31 // pred_region
          %s384 = ssub.s32 256, 256
          %385 = vsyncadd %s376, %s384
          %s386 = smul.addr %s20, 2
          %s387 = smul.addr %s386, 128
          %s388 = scalar_lea.hbm %s3, %s387
          %s390 = sshll.u32 %s379, 4
          %s391 = int_to_ptr.vmem [resolvable:$true] %s390
          %393 = dma.vmem_to_hbm [thread:$0]  %s391, 256, %s388, %s376
        $region40: #{tpu_custom_call.1} parent=31 // pred_fallthru
          _
      $region32: #{tpu_custom_call.1} parent=5 // pred_fallthru
        _
      %p394 = scmp.le.s32.totalorder 2, %s15
      // Predicated region
      $region41: #{tpu_custom_call.1} parent=5 // pred_check
        %p395 = pneg %p394
      $region42: #{tpu_custom_call.1} parent=5 // pred_check_branch
        %397 = sbr.rel (%p395) target = $region44
      $region43: #{tpu_custom_call.1} parent=5 // pred_region
        %s398 = ssub.s32 %s15, 2
        // Predicated region
        $region45: #{tpu_custom_call.1} parent=43 // pred_check
          %p399 = pneg %p112
        $region46: #{tpu_custom_call.1} parent=43 // pred_check_branch
          %401 = sbr.rel (%p399) target = $region48
        $region47: #{tpu_custom_call.1} parent=43 // pred_region
          %s402 = sand.u32 %s97, 1
          %s403 = scalar_lea.sflag [#allocation4], %s402
          %s404 = sand.u32 %s97, 1
          %s405 = smul.addr %s404, 16
          %s406 = scalar_lea.vmem [#allocation5], %s405
          %407 = dma.done %s403, 256
        $region48: #{tpu_custom_call.1} parent=43 // pred_fallthru
          _
      $region44: #{tpu_custom_call.1} parent=5 // pred_fallthru
        _
    $region6: #{tpu_custom_call.1} parent=1 // loop_footer
      %s19 = sadd.s32 1, %s15
    $region7: #{tpu_custom_call.1} parent=1 // loop_footer_branch
      %14 = sbr.rel target = $region3
    $region8: #{tpu_custom_call.1} parent=1 // loop_exit
      _
    %408 = vsyncpa [#allocation3], 1
    %s409 = scalar_lea.sflag [#allocation3], 1
    %410 = vsyncpa %s409, 1
    %411 = vsyncpa [#allocation4], 1
    %s412 = scalar_lea.sflag [#allocation4], 1
    %413 = vsyncpa %s412, 1

</llo_original>
